<compile_context>
chip_gen: v6e
topology: v6e:2x2x1
jax: 0.10.0
libtpu: 0.0.40
codegen_flags: <defaults>
</compile_context>

<pallas_src>
import jax
import jax.numpy as jnp
from jax.experimental import pallas as pl
from jax.experimental.pallas import tpu as pltpu

_LANES = 128


def _make_full_kernel(hw):
    """Whole H*W resident per grid step: grid = (N // bn,)."""
    inv_hw = 1.0 / float(hw)

    def kernel(x_ref, w1_ref, w2_ref, o_ref):
        x = x_ref[...].astype(jnp.float32)            # (bn, C, HW); f32 accumulation
        avg = jnp.sum(x, axis=-1) * inv_hw            # (bn, C)  adaptive avg pool
        mx = jnp.max(x, axis=-1)                      # (bn, C)  adaptive max pool
        w1 = w1_ref[...].astype(jnp.float32)          # (C, C//16)
        w2 = w2_ref[...].astype(jnp.float32)          # (C//16, C)
        h = (jnp.maximum(jnp.dot(avg, w1, preferred_element_type=jnp.float32), 0.0)
             + jnp.maximum(jnp.dot(mx, w1, preferred_element_type=jnp.float32), 0.0))
        out = jnp.dot(h, w2, preferred_element_type=jnp.float32)
        o_ref[...] = jax.nn.sigmoid(out).reshape(o_ref.shape).astype(o_ref.dtype)

    return kernel


def _make_chunked_kernel(hw, tile):
    """H*W chunked: grid = (N, num_k); deferred lane reduction; last-tile-only mask."""
    nsub = tile // _LANES
    ragged = (hw % tile) != 0
    inv_hw = 1.0 / float(hw)

    def kernel(x_ref, w1_ref, w2_ref, o_ref, sum_sc, max_sc):
        k = pl.program_id(1)
        nk = pl.num_programs(1)

        @pl.when(k == 0)
        def _init():
            sum_sc[...] = jnp.zeros_like(sum_sc)
            max_sc[...] = jnp.full_like(max_sc, -jnp.inf)

        x = x_ref[...].astype(jnp.float32)            # (1, C, tile)

        def accumulate(masked):
            s = sum_sc[...]
            m = max_sc[...]
            if masked:
                lane = jax.lax.broadcasted_iota(jnp.int32, (1, 1, _LANES), 2)
            for j in range(nsub):                     # static unroll: pure VALU work
                chunk = x[:, :, j * _LANES:(j + 1) * _LANES]
                if masked:
                    valid = (k * tile + j * _LANES + lane) < hw
                    s = s + jnp.where(valid, chunk, 0.0)
                    m = jnp.maximum(m, jnp.where(valid, chunk, -jnp.inf))
                else:
                    s = s + chunk
                    m = jnp.maximum(m, chunk)
            sum_sc[...] = s
            max_sc[...] = m

        if ragged:
            # Mask only on the final (possibly partial) tile -- off the hot path.
            @pl.when(k < nk - 1)
            def _hot():
                accumulate(False)

            @pl.when(k == nk - 1)
            def _tail():
                accumulate(True)
        else:
            accumulate(False)

        @pl.when(k == nk - 1)
        def _finalize():
            avg = jnp.sum(sum_sc[...], axis=-1) * inv_hw   # single XLU collapse
            mx = jnp.max(max_sc[...], axis=-1)
            w1 = w1_ref[...].astype(jnp.float32)
            w2 = w2_ref[...].astype(jnp.float32)
            h = (jnp.maximum(jnp.dot(avg, w1, preferred_element_type=jnp.float32), 0.0)
                 + jnp.maximum(jnp.dot(mx, w1, preferred_element_type=jnp.float32), 0.0))
            out = jnp.dot(h, w2, preferred_element_type=jnp.float32)
            o_ref[...] = jax.nn.sigmoid(out).reshape(o_ref.shape).astype(o_ref.dtype)

    return kernel


def channel_attention(x, w1, w2, *,
                      block_budget_bytes=24 * 1024 * 1024,
                      vmem_limit_bytes=None):
    """CBAM ChannelAttention forward.

    x: (N, C, H, W) any float dtype; w1: (C//16, C); w2: (C, C//16).
    Returns (N, C, 1, 1) in x.dtype.
    """
    n, c, h, w = x.shape
    hw = h * w
    hidden = w1.shape[0]
    assert w1.shape == (hidden, c) and w2.shape == (c, hidden)

    xf = x.reshape(n, c, hw)                 # native dtype on the wire (no upcast)
    w1t = jnp.transpose(w1)                  # (C, hidden)  -> plain jnp.dot in kernel
    w2t = jnp.transpose(w2)                  # (hidden, C)

    itemsize = jnp.dtype(x.dtype).itemsize
    # VMEM cost per x element: double-buffered native block + one in-kernel f32 copy.
    per_elem = 2 * itemsize + 4
    row_bytes = c * hw * per_elem            # one batch item, full spatial extent

    divisors = [d for d in range(1, n + 1) if n % d == 0]
    fit = [d for d in divisors if d * row_bytes <= block_budget_bytes]
    # Prefer >= 2 blocks on the parallel batch axis so v7x's two TensorCores both
    # get work; otherwise take the largest block that fits the budget.
    two_block = [d for d in fit if n // d >= 2]

    if fit or hw <= _LANES:
        # ---- fast path: full H*W per block, contiguous DMA, no masking ----
        bn = max(two_block) if two_block else (max(fit) if fit else 1)
        tile = hw
        kernel = _make_full_kernel(hw)
        grid = (n // bn,)
        in_specs = [
            pl.BlockSpec((bn, c, hw), lambda i: (i, 0, 0)),
            pl.BlockSpec((c, hidden), lambda i: (0, 0)),
            pl.BlockSpec((hidden, c), lambda i: (0, 0)),
        ]
        out_specs = pl.BlockSpec((bn, 1, c), lambda i: (i, 0, 0))
        scratch_shapes = []
        dim_sem = ("parallel",)
    else:
        # ---- fallback: chunk the spatial axis (reduction axis last) ----
        # TODO(synk): for N == 1 on v7x this leaves one TensorCore idle; a
        # half-range split of the H*W reduction would feed both cores.
        bn = 1
        max_tile = max(_LANES,
                       (block_budget_bytes // (c * per_elem)) // _LANES * _LANES)
        tile = min((hw // _LANES) * _LANES, max_tile)
        num_k = pl.cdiv(hw, tile)
        kernel = _make_chunked_kernel(hw, tile)
        grid = (n, num_k)
        in_specs = [
            pl.BlockSpec((bn, c, tile), lambda i, k: (i, 0, k)),
            pl.BlockSpec((c, hidden), lambda i, k: (0, 0)),
            pl.BlockSpec((hidden, c), lambda i, k: (0, 0)),
        ]
        out_specs = pl.BlockSpec((bn, 1, c), lambda i, k: (i, 0, 0))
        scratch_shapes = [
            pltpu.VMEM((bn, c, _LANES), jnp.float32),   # deferred running sum
            pltpu.VMEM((bn, c, _LANES), jnp.float32),   # deferred running max
        ]
        dim_sem = ("parallel", "arbitrary")

    if vmem_limit_bytes is None:
        block_native = bn * c * tile * itemsize
        need = (2 * block_native                    # double-buffered x block
                + bn * c * tile * 4                 # in-kernel f32 copy of the block
                + 2 * c * hidden * 4                # weights
                + 2 * bn * c * _LANES * 4           # scratch accumulators
                + (4 << 20))                        # headroom
        vmem_limit_bytes = int(min(64 * 2 ** 20, max(32 * 2 ** 20, need)))

    # Advisory cost estimate (reduction counted as cheap elementwise work).
    flops = 3 * n * c * hw + 6 * n * hidden * c
    bytes_accessed = (x.size * itemsize
                      + w1.size * jnp.dtype(w1.dtype).itemsize
                      + w2.size * jnp.dtype(w2.dtype).itemsize
                      + n * c * itemsize)
    cost = pl.CostEstimate(flops=int(flops), transcendentals=int(n * c),
                           bytes_accessed=int(bytes_accessed))

    out = pl.pallas_call(
        kernel,
        out_shape=jax.ShapeDtypeStruct((n, 1, c), x.dtype),
        grid_spec=pltpu.PrefetchScalarGridSpec(
            num_scalar_prefetch=0,
            grid=grid,
            in_specs=in_specs,
            out_specs=out_specs,
            scratch_shapes=scratch_shapes,
        ),
        compiler_params=pltpu.CompilerParams(
            dimension_semantics=dim_sem,
            vmem_limit_bytes=vmem_limit_bytes,
        ),
        cost_estimate=cost,
    )(xf, w1t, w2t)

    return out.reshape(n, c, 1, 1)


def channel_attention_ref(x, w1, w2):
    # Pure-JAX reference mirroring the PyTorch forward (f32 math).
    xf = x.astype(jnp.float32)
    avg = jnp.mean(xf, axis=(2, 3))   # (N, C)
    mx = jnp.max(xf, axis=(2, 3))     # (N, C)
    w1f = w1.astype(jnp.float32)
    w2f = w2.astype(jnp.float32)

    def fc(p):
        return jnp.maximum(p @ w1f.T, 0.0) @ w2f.T

    out = jax.nn.sigmoid(fc(avg) + fc(mx))
    return out.reshape(x.shape[0], x.shape[1], 1, 1).astype(x.dtype)


if __name__ == "__main__":
    key = jax.random.PRNGKey(0)
    k_x, k_w1, k_w2, k_x2 = jax.random.split(key, 4)

    # in_planes must be >= 16 since the module hard-codes in_planes // 16.
    N, C, H, W = 2, 32, 16, 16
    hidden = C // 16

    x = jax.random.normal(k_x, (N, C, H, W), dtype=jnp.float32)
    w1 = jax.random.normal(k_w1, (hidden, C), dtype=jnp.float32) * 0.1
    w2 = jax.random.normal(k_w2, (C, hidden), dtype=jnp.float32) * 0.1

    # 1) Fast path: one contiguous (bn, C, H*W) block per grid step.
    out = jax.block_until_ready(channel_attention(x, w1, w2))
    ref = channel_attention_ref(x, w1, w2)
    assert out.shape == (N, C, 1, 1)
    assert jnp.allclose(out, ref, atol=1e-5, rtol=1e-5)

    # 2) Chunked-H*W path (forced via a tiny VMEM budget), exact tiling.
    out2 = jax.block_until_ready(
        channel_attention(x, w1, w2, block_budget_bytes=64 * 1024))
    assert jnp.allclose(out2, ref, atol=1e-5, rtol=1e-5)

    # 3) Chunked-H*W path with a ragged (masked, last-step-only) tail tile.
    x3 = jax.random.normal(k_x2, (N, C, 12, 12), dtype=jnp.float32)   # H*W = 144
    out3 = jax.block_until_ready(
        channel_attention(x3, w1, w2, block_budget_bytes=40 * 1024))
    ref3 = channel_attention_ref(x3, w1, w2)
    assert jnp.allclose(out3, ref3, atol=1e-5, rtol=1e-5)

    # 4) Native bf16 DMA with f32 in-kernel accumulation; output keeps x.dtype.
    xb = x.astype(jnp.bfloat16)
    out4 = jax.block_until_ready(channel_attention(xb, w1, w2))
    ref4 = channel_attention_ref(xb, w1, w2)
    assert out4.dtype == jnp.bfloat16
    assert jnp.allclose(out4.astype(jnp.float32), ref4.astype(jnp.float32),
                        atol=2e-2, rtol=2e-2)

    print("KERNEL_OK")
</pallas_src>

<mosaic_0001>
module attributes {stable_mosaic.version = 11 : i64} {
  func.func @kernel(%arg0: i32, %arg1: memref<1x32x256xf32, #tpu.memory_space<vmem>>, %arg2: memref<32x2xf32, #tpu.memory_space<vmem>>, %arg3: memref<2x32xf32, #tpu.memory_space<vmem>>, %arg4: memref<1x1x32xf32, #tpu.memory_space<vmem>>) attributes {dimension_semantics = [#tpu.dimension_semantics<parallel>], iteration_bounds = array<i64: 2>, scalar_prefetch = 0 : i64, scratch_operands = 0 : i64, tpu.core_type = #tpu.core_type<tc>, window_params = [{transform_indices = @transform_0, window_bounds = array<i64: 1, 32, 256>}, {pipeline_mode = #tpu.pipeline_mode<synchronous>, transform_indices = @transform_1, window_bounds = array<i64: 32, 2>}, {pipeline_mode = #tpu.pipeline_mode<synchronous>, transform_indices = @transform_2, window_bounds = array<i64: 2, 32>}, {transform_indices = @transform_3, window_bounds = array<i64: 1, 1, 32>}]} {
    %c0 = arith.constant 0 : index
    %c0_0 = arith.constant 0 : index
    %c0_1 = arith.constant 0 : index
    %0 = vector.load %arg1[%c0, %c0_0, %c0_1] : memref<1x32x256xf32, #tpu.memory_space<vmem>>, vector<1x32x256xf32>
    %cst = arith.constant dense<0.000000e+00> : vector<1x32xf32>
    %1 = vector.multi_reduction <add>, %0, %cst [2] : vector<1x32x256xf32> to vector<1x32xf32>
    %cst_2 = arith.constant 3.906250e-03 : f32
    %2 = vector.broadcast %cst_2 : f32 to vector<1x32xf32>
    %3 = arith.mulf %1, %2 : vector<1x32xf32>
    %cst_3 = arith.constant dense<0xFF800000> : vector<1x32xf32>
    %4 = vector.multi_reduction <maximumf>, %0, %cst_3 [2] : vector<1x32x256xf32> to vector<1x32xf32>
    %c0_4 = arith.constant 0 : index
    %c0_5 = arith.constant 0 : index
    %5 = vector.load %arg2[%c0_4, %c0_5] : memref<32x2xf32, #tpu.memory_space<vmem>>, vector<32x2xf32>
    %c0_6 = arith.constant 0 : index
    %c0_7 = arith.constant 0 : index
    %6 = vector.load %arg3[%c0_6, %c0_7] : memref<2x32xf32, #tpu.memory_space<vmem>>, vector<2x32xf32>
    %cst_8 = arith.constant dense<0.000000e+00> : vector<1x2xf32>
    %7 = tpu.matmul %3, %5, %cst_8 {dimension_numbers = #tpu.dot_dimension_numbers<[1], [0], [0], [1], [0, 0, 1, 1], [], []>} : vector<1x32xf32>, vector<32x2xf32>, vector<1x2xf32> -> vector<1x2xf32>
    %cst_9 = arith.constant 0.000000e+00 : f32
    %8 = vector.broadcast %cst_9 : f32 to vector<1x2xf32>
    %9 = arith.maximumf %7, %8 : vector<1x2xf32>
    %cst_10 = arith.constant dense<0.000000e+00> : vector<1x2xf32>
    %10 = tpu.matmul %4, %5, %cst_10 {dimension_numbers = #tpu.dot_dimension_numbers<[1], [0], [0], [1], [0, 0, 1, 1], [], []>} : vector<1x32xf32>, vector<32x2xf32>, vector<1x2xf32> -> vector<1x2xf32>
    %cst_11 = arith.constant 0.000000e+00 : f32
    %11 = vector.broadcast %cst_11 : f32 to vector<1x2xf32>
    %12 = arith.maximumf %10, %11 : vector<1x2xf32>
    %13 = arith.addf %9, %12 : vector<1x2xf32>
    %cst_12 = arith.constant dense<0.000000e+00> : vector<1x32xf32>
    %14 = tpu.matmul %13, %6, %cst_12 {dimension_numbers = #tpu.dot_dimension_numbers<[1], [0], [0], [1], [0, 0, 1, 1], [], []>} : vector<1x2xf32>, vector<2x32xf32>, vector<1x32xf32> -> vector<1x32xf32>
    %15 = arith.negf %14 : vector<1x32xf32>
    %16 = math.exp %15 : vector<1x32xf32>
    %cst_13 = arith.constant 1.000000e+00 : f32
    %17 = vector.broadcast %cst_13 : f32 to vector<1x32xf32>
    %18 = arith.addf %17, %16 : vector<1x32xf32>
    %19 = arith.divf %17, %18 : vector<1x32xf32>
    %20 = vector.shape_cast %19 : vector<1x32xf32> to vector<1x1x32xf32>
    %c0_14 = arith.constant 0 : index
    %c0_15 = arith.constant 0 : index
    %c0_16 = arith.constant 0 : index
    %21 = vector.load %arg4[%c0_14, %c0_15, %c0_16] : memref<1x1x32xf32, #tpu.memory_space<vmem>>, vector<1x1x32xf32>
    tpu.vector_store %arg4[%c0_14, %c0_15, %c0_16], %20 {strides = array<i32>} : memref<1x1x32xf32, #tpu.memory_space<vmem>>, vector<1x1x32xf32>,
    return
  }
  func.func @transform_0(%arg0: i32) -> (i32, i32, i32) {
    %c0_i32 = arith.constant 0 : i32
    %c0_i32_0 = arith.constant 0 : i32
    %c0_i32_1 = arith.constant 0 : i32
    return %arg0, %c0_i32, %c0_i32_0 : i32, i32, i32
  }
  func.func @transform_1(%arg0: i32) -> (i32, i32) {
    %c0_i32 = arith.constant 0 : i32
    %c0_i32_0 = arith.constant 0 : i32
    %c0_i32_1 = arith.constant 0 : i32
    return %c0_i32, %c0_i32_0 : i32, i32
  }
  func.func @transform_2(%arg0: i32) -> (i32, i32) {
    %c0_i32 = arith.constant 0 : i32
    %c0_i32_0 = arith.constant 0 : i32
    %c0_i32_1 = arith.constant 0 : i32
    return %c0_i32, %c0_i32_0 : i32, i32
  }
  func.func @transform_3(%arg0: i32) -> (i32, i32, i32) {
    %c0_i32 = arith.constant 0 : i32
    %c0_i32_0 = arith.constant 0 : i32
    %c0_i32_1 = arith.constant 0 : i32
    return %arg0, %c0_i32, %c0_i32_0 : i32, i32, i32
  }
}

</mosaic_0001>

<llo_original>
// kernel: tpu_custom_call.1
$region0: #{tpu_custom_call.1}
  #allocation0 [shape = 'u32[]', space=smem, size = 0x4, offset = 0x4, fixed_abs, tag = 'smem constant byte address 0x4 - core index']
  #allocation1 [shape = 'u32[144,128]{1,0:T(1,128)}', space=vmem, size = 0x12000, scoped, tag = 'internal scratch']
  %s0 = inlined_call_operand.hbm [shape: f32[2,32,256], index: 0, kind: input, shape index: {}]
  %s1 = inlined_call_operand.vmem [shape: f32[32,2], index: 1, kind: input, shape index: {}]
  %s2 = inlined_call_operand.vmem [shape: f32[2,32], index: 2, kind: input, shape index: {}]
  %s3 = inlined_call_operand.hbm [shape: f32[2,1,32], index: 3, kind: output, shape index: {}]
  %s4 = sld [smem:[#allocation0]]
  $region49: #{tpu_custom_call.1} parent=0
    _
  %s6 = ssub.s32 1, %s4
  %s7 = scalar_select 0, %s6, %s4
  $region1: #{tpu_custom_call.1} parent=0
    #allocation2 [shape = 'u8[65536]{0}', space=vmem, size = 0x10000, scoped, tag = 'input window, operand 0']
    #allocation3 [shape = 's32[2]{0}', space=sflag, size = 0x8, scoped, tag = 'scoped memory for tpu_custom_call.1']
    #allocation4 [shape = 's32[2]{0}', space=sflag, size = 0x8, scoped, tag = 'scoped memory for tpu_custom_call.1']
    #allocation5 [shape = 'u8[1024]{0}', space=vmem, size = 0x400, scoped, tag = 'output window, operand 0']
    %8 = vsyncpa [#allocation3], 0
    %s9 = scalar_lea.sflag [#allocation3], 1
    %10 = vsyncpa %s9, 0
    %11 = vsyncpa [#allocation4], 0
    %s12 = scalar_lea.sflag [#allocation4], 1
    %13 = vsyncpa %s12, 0
    loop: start=0, step=1, limit=4
    $region2: #{tpu_custom_call.1} parent=1 // loop_pre_header
      _
    $region3: #{tpu_custom_call.1} parent=1 // loop_header
      %s15 = sphi 0, %s19
      %p16 = scmp.ge.s32.totalorder %s15, 4
      %s25 = sphi 0, %s27
      %s28 = sphi 0, %s25
      %s29 = sphi 0, %s28
      %s45 = sphi 0, %s29
      %s49 = sphi 0, %s49
      %s51 = sphi 0, %s49
      %s52 = sphi 0, %s51
      %s66 = sphi 0, %s52
      %s70 = sphi 0, %s70
      %s72 = sphi 0, %s70
      %s73 = sphi 0, %s72
      %s87 = sphi 0, %s73
      %s93 = sphi 0, %s95
      %s96 = sphi 0, %s93
      %s97 = sphi 0, %s96
      %s113 = sphi 0, %s97
    $region4: #{tpu_custom_call.1} parent=1 // loop_header_branch
      %18 = sbr.rel (%p16) target = $region8
    $region5: #{tpu_custom_call.1} parent=1 // loop_body
      %s20 = ssub.s32 %s15, 1
      %s21 = ssub.s32 %s15, 2
      %s22 = sadd.s32 %s15, 1
      %s23 = ssub.s32 %s15, %s22
      %p24 = scmp.eq.s32.totalorder %s23, 0
      %s26 = sadd.s32 %s25, 1
      %s27 = scalar_select %p24, %s25, %s26
      %p30 = pneg %p24
      %p31 = scmp.eq.s32.totalorder %s15, 1
      %p32 = por %p30, %p31
      %p33 = scmp.ne.s32.totalorder %s25, %s28
      %p34 = scmp.eq.s32.totalorder %s15, 0
      %p35 = por %p33, %p34
      %p36 = scmp.ne.s32.totalorder %s25, %s28
      %p37 = scmp.eq.s32.totalorder %s20, 1
      %p38 = por %p36, %p37
      %p39 = scmp.ne.s32.totalorder %s28, %s29
      %p40 = scmp.eq.s32.totalorder %s20, 0
      %p41 = por %p39, %p40
      %p42 = scmp.ne.s32.totalorder %s28, %s29
      %p43 = scmp.eq.s32.totalorder %s21, 1
      %p44 = por %p42, %p43
      %p46 = scmp.ne.s32.totalorder %s29, %s45
      %p47 = scmp.eq.s32.totalorder %s21, 0
      %p48 = por %p46, %p47
      %s50 = sadd.s32 %s49, 1
      %p53 = scmp.eq.s32.totalorder %s15, 1
      %p54 = scmp.ne.s32.totalorder %s49, %s51
      %p55 = scmp.eq.s32.totalorder %s15, 0
      %p56 = por %p54, %p55
      %p57 = scmp.ne.s32.totalorder %s49, %s51
      %p58 = scmp.eq.s32.totalorder %s20, 1
      %p59 = por %p57, %p58
      %p60 = scmp.ne.s32.totalorder %s51, %s52
      %p61 = scmp.eq.s32.totalorder %s20, 0
      %p62 = por %p60, %p61
      %p63 = scmp.ne.s32.totalorder %s51, %s52
      %p64 = scmp.eq.s32.totalorder %s21, 1
      %p65 = por %p63, %p64
      %p67 = scmp.ne.s32.totalorder %s52, %s66
      %p68 = scmp.eq.s32.totalorder %s21, 0
      %p69 = por %p67, %p68
      %s71 = sadd.s32 %s70, 1
      %p74 = scmp.eq.s32.totalorder %s15, 1
      %p75 = scmp.ne.s32.totalorder %s70, %s72
      %p76 = scmp.eq.s32.totalorder %s15, 0
      %p77 = por %p75, %p76
      %p78 = scmp.ne.s32.totalorder %s70, %s72
      %p79 = scmp.eq.s32.totalorder %s20, 1
      %p80 = por %p78, %p79
      %p81 = scmp.ne.s32.totalorder %s72, %s73
      %p82 = scmp.eq.s32.totalorder %s20, 0
      %p83 = por %p81, %p82
      %p84 = scmp.ne.s32.totalorder %s72, %s73
      %p85 = scmp.eq.s32.totalorder %s21, 1
      %p86 = por %p84, %p85
      %p88 = scmp.ne.s32.totalorder %s73, %s87
      %p89 = scmp.eq.s32.totalorder %s21, 0
      %p90 = por %p88, %p89
      %s91 = ssub.s32 %s15, %s22
      %p92 = scmp.eq.s32.totalorder %s91, 0
      %s94 = sadd.s32 %s93, 1
      %s95 = scalar_select %p92, %s93, %s94
      %p98 = pneg %p92
      %p99 = scmp.eq.s32.totalorder %s15, 1
      %p100 = por %p98, %p99
      %p101 = scmp.ne.s32.totalorder %s93, %s96
      %p102 = scmp.eq.s32.totalorder %s15, 0
      %p103 = por %p101, %p102
      %p104 = scmp.ne.s32.totalorder %s93, %s96
      %p105 = scmp.eq.s32.totalorder %s20, 1
      %p106 = por %p104, %p105
      %p107 = scmp.ne.s32.totalorder %s96, %s97
      %p108 = scmp.eq.s32.totalorder %s20, 0
      %p109 = por %p107, %p108
      %p110 = scmp.ne.s32.totalorder %s96, %s97
      %p111 = scmp.eq.s32.totalorder %s21, 1
      %p112 = por %p110, %p111
      %p114 = scmp.ne.s32.totalorder %s97, %s113
      %p115 = scmp.eq.s32.totalorder %s21, 0
      %p116 = por %p114, %p115
      %p117 = scmp.le.s32.totalorder 1, %s15
      %p118 = scmp.lt.s32.totalorder %s15, 3
      %p119 = pnand %p117, %p118
      %p120 = pneg %p119
      // Predicated region
      $region9: #{tpu_custom_call.1} parent=5 // pred_check
        _
      $region10: #{tpu_custom_call.1} parent=5 // pred_check_branch
        %122 = sbr.rel (%p119) target = $region12
      $region11: #{tpu_custom_call.1} parent=5 // pred_region
        %s123 = ssub.s32 %s15, 1
        // Predicated region
        $region13: #{tpu_custom_call.1} parent=11 // pred_check
          %p124 = pneg %p62
        $region14: #{tpu_custom_call.1} parent=11 // pred_check_branch
          %126 = sbr.rel (%p124) target = $region16
        $region15: #{tpu_custom_call.1} parent=11 // pred_region
          _
        $region16: #{tpu_custom_call.1} parent=11 // pred_fallthru
          _
        // Predicated region
        $region17: #{tpu_custom_call.1} parent=11 // pred_check
          %p127 = pneg %p83
        $region18: #{tpu_custom_call.1} parent=11 // pred_check_branch
          %129 = sbr.rel (%p127) target = $region20
        $region19: #{tpu_custom_call.1} parent=11 // pred_region
          _
        $region20: #{tpu_custom_call.1} parent=11 // pred_fallthru
          _
      $region12: #{tpu_custom_call.1} parent=5 // pred_fallthru
        _
      %p130 = scmp.lt.s32.totalorder %s15, 2
      // Predicated region
      $region21: #{tpu_custom_call.1} parent=5 // pred_check
        %p131 = pneg %p130
      $region22: #{tpu_custom_call.1} parent=5 // pred_check_branch
        %133 = sbr.rel (%p131) target = $region24
      $region23: #{tpu_custom_call.1} parent=5 // pred_region
        // Predicated region
        $region25: #{tpu_custom_call.1} parent=23 // pred_check
          %p134 = pneg %p35
        $region26: #{tpu_custom_call.1} parent=23 // pred_check_branch
          %136 = sbr.rel (%p134) target = $region28
        $region27: #{tpu_custom_call.1} parent=23 // pred_region
          %s137 = sand.u32 %s25, 1
          %s138 = scalar_lea.sflag [#allocation3], %s137
          %s139 = sand.u32 %s25, 1
          %s140 = smul.addr %s139, 64
          %s141 = scalar_lea.vmem [#allocation2], %s140
          %s143 = ssub.s32 1024, 1024
          %144 = vsyncadd %s138, %s143
          %s145 = smul.addr %s15, 8
          %s146 = smul.addr %s145, 128
          %s147 = scalar_lea.hbm %s0, %s146
          %s148 = sshll.u32 %s141, 4
          %s149 = int_to_ptr.vmem [resolvable:$true] %s148
          %154 = dma.hbm_to_vmem [thread:$0]  %s147, 1024, %s149, %s138, 256, 256, 16
        $region28: #{tpu_custom_call.1} parent=23 // pred_fallthru
          _
      $region24: #{tpu_custom_call.1} parent=5 // pred_fallthru
        _
      %p155 = scmp.le.s32.totalorder 1, %s15
      %p156 = scmp.lt.s32.totalorder %s15, 3
      %p157 = pnand %p155, %p156
      %p158 = pneg %p157
      // Predicated region
      $region29: #{tpu_custom_call.1} parent=5 // pred_check
        _
      $region30: #{tpu_custom_call.1} parent=5 // pred_check_branch
        %160 = sbr.rel (%p157) target = $region32
      $region31: #{tpu_custom_call.1} parent=5 // pred_region
        %s161 = ssub.s32 %s15, 1
        %s162 = sand.u32 %s28, 1
        %s163 = scalar_lea.sflag [#allocation3], %s162
        %s164 = sand.u32 %s28, 1
        %s165 = smul.addr %s164, 64
        %s166 = scalar_lea.vmem [#allocation2], %s165
        // Predicated region
        $region33: #{tpu_custom_call.1} parent=31 // pred_check
          %p167 = pneg %p41
        $region34: #{tpu_custom_call.1} parent=31 // pred_check_branch
          %169 = sbr.rel (%p167) target = $region36
        $region35: #{tpu_custom_call.1} parent=31 // pred_region
          %170 = dma.done %s163, 1024
        $region36: #{tpu_custom_call.1} parent=31 // pred_fallthru
          _
        %s171 = sand.u32 %s28, 1
        %s172 = scalar_lea.sflag [#allocation3], %s171
        %s173 = sand.u32 %s28, 1
        %s174 = smul.addr %s173, 64
        %s175 = scalar_lea.vmem [#allocation2], %s174
        %p176 = pneg %p41
        %p177 = pneg %p38
        %p178 = pneg %p62
        %p179 = pneg %p59
        %p180 = pneg %p83
        %p181 = pneg %p80
        %p182 = pneg %p109
        %p183 = pneg %p106
        %s184 = sand.u32 %s96, 1
        %s185 = scalar_lea.sflag [#allocation4], %s184
        %s186 = sand.u32 %s96, 1
        %s187 = scalar_lea.vmem [#allocation5], %s186
        %v188 = vld [vmem:[%s166] sm:$0xff]
        %v189 = vld [vmem:[%s166 + $0x8] sm:$0xff]
        %v190 = vld [vmem:[%s166 + $0x10] sm:$0xff]
        %v191 = vld [vmem:[%s166 + $0x18] sm:$0xff]
        %v192 = vld [vmem:[%s166 + $0x20] sm:$0xff]
        %v193 = vld [vmem:[%s166 + $0x28] sm:$0xff]
        %v194 = vld [vmem:[%s166 + $0x30] sm:$0xff]
        %v195 = vld [vmem:[%s166 + $0x38] sm:$0xff]
        %v196 = vadd.f32 %v188, %v189
        %197 = vadd.xlane.f32.xlu0 %v196
        %v198 = vpop.xlane.xlu0 %197
        %v199 = vadd.f32 %v190, %v191
        %200 = vadd.xlane.f32.xlu0 %v199
        %v201 = vpop.xlane.xlu0 %200
        %v202 = vadd.f32 %v192, %v193
        %203 = vadd.xlane.f32.xlu0 %v202
        %v204 = vpop.xlane.xlu0 %203
        %v205 = vadd.f32 %v194, %v195
        %206 = vadd.xlane.f32.xlu0 %v205
        %v207 = vpop.xlane.xlu0 %206
        %v208 = vmul.f32 %v198, 0.00390625
        %v209 = vmul.f32 %v201, 0.00390625
        %v210 = vmul.f32 %v204, 0.00390625
        %v211 = vmul.f32 %v207, 0.00390625
        %v212 = vmax.f32 %v188, %v189
        %213 = vmax.xlane.f32.xlu0 %v212
        %v214 = vpop.xlane.xlu0 %213
        %v215 = vmax.f32 %v190, %v191
        %216 = vmax.xlane.f32.xlu0 %v215
        %v217 = vpop.xlane.xlu0 %216
        %v218 = vmax.f32 %v192, %v193
        %219 = vmax.xlane.f32.xlu0 %v218
        %v220 = vpop.xlane.xlu0 %219
        %v221 = vmax.f32 %v194, %v195
        %222 = vmax.xlane.f32.xlu0 %v221
        %v223 = vpop.xlane.xlu0 %222
        %v224 = vld [vmem:[%s1] sm:$0xff]
        %v225 = vld [vmem:[%s1 + $0x8] sm:$0xff]
        %v226 = vld [vmem:[%s1 + $0x10] sm:$0xff]
        %v227 = vld [vmem:[%s1 + $0x18] sm:$0xff]
        %v228 = vld [vmem:[%s2] sm:$0x3]
        %v233 = vlaneseq
        %v234 = vand.u32 %v233, 127
        %v235 = vlaneseq
        %v236 = vshrl.u32 %v235, 7
        %v237 = vsub.s32 %v234, %v236
        %v238 = vrot.slane %v208, %v237
        %v239 = vadd.s32 %v234, 4294967288
        %v240 = vlaneseq
        %v241 = vshrl.u32 %v240, 7
        %v242 = vsub.s32 %v239, %v241
        %v243 = vrot.slane %v209, %v242
        %vm244 = vcmask 130112
        %v245 = vsel %vm244, %v243, %v238
        %v246 = vadd.s32 %v234, 4294967280
        %v247 = vlaneseq
        %v248 = vshrl.u32 %v247, 7
        %v249 = vsub.s32 %v246, %v248
        %v250 = vrot.slane %v210, %v249
        %vm251 = vcmask 195712
        %v252 = vsel %vm251, %v250, %v245
        %v253 = vadd.s32 %v234, 4294967272
        %v254 = vlaneseq
        %v255 = vshrl.u32 %v254, 7
        %v256 = vsub.s32 %v253, %v255
        %v257 = vrot.slane %v211, %v256
        %vm258 = vcmask 261312
        %v259 = vsel %vm258, %v257, %v252
        %vm260 = vcmask 261120
        %v261 = vsel %vm260, %v259, 0
        %263 = vmatprep.subr.mxu0 0.0
        %264 = vmatpush1.msra.mxu0 0.0
        %265 = vmatprep.subr.mxu0 0.0
        %266 = vmatpush1.msra.mxu0 0.0
        %267 = vmatprep.subr.mxu0 0.0
        %268 = vmatpush1.msra.mxu0 0.0
        %269 = vmatprep.subr.mxu0 0.0
        %270 = vmatpush1.msra.mxu0 0.0
        %271 = vmatprep.subr.mxu0 0.0
        %272 = vmatpush1.msra.mxu0 0.0
        %273 = vmatprep.subr.mxu0 0.0
        %274 = vmatpush1.msra.mxu0 0.0
        %275 = vmatprep.subr.mxu0 0.0
        %276 = vmatpush1.msra.mxu0 0.0
        %277 = vmatprep.subr.mxu0 0.0
        %278 = vmatpush1.msra.mxu0 0.0
        %279 = vmatprep.subr.mxu0 0.0
        %280 = vmatpush1.msra.mxu0 0.0
        %281 = vmatprep.subr.mxu0 0.0
        %282 = vmatpush1.msra.mxu0 0.0
        %283 = vmatprep.subr.mxu0 0.0
        %284 = vmatpush1.msra.mxu0 0.0
        %285 = vmatprep.subr.mxu0 0.0
        %286 = vmatpush1.msra.mxu0 0.0
        %287 = vmatprep.subr.mxu0 0.0
        %288 = vmatpush1.msra.mxu0 %v227
        %289 = vmatprep.subr.mxu0 0.0
        %290 = vmatpush1.msra.mxu0 %v226
        %291 = vmatprep.subr.mxu0 0.0
        %292 = vmatpush1.msra.mxu0 %v225
        %293 = vmatprep.subr.mxu0 0.0
        %294 = vmatpush1.msra.mxu0 %v224
        %295 = vmatprep.subr.mxu0 0.0
        %296 = vmatpush2.msra.mxu0 0.0
        %297 = vmatprep.subr.mxu0 0.0
        %298 = vmatpush2.msra.mxu0 0.0
        %299 = vmatprep.subr.mxu0 0.0
        %300 = vmatpush2.msra.mxu0 0.0
        %301 = vmatprep.subr.mxu0 0.0
        %302 = vmatpush2.msra.mxu0 0.0
        %303 = vmatprep.subr.mxu0 0.0
        %304 = vmatpush2.msra.mxu0 0.0
        %305 = vmatprep.subr.mxu0 0.0
        %306 = vmatpush2.msra.mxu0 0.0
        %307 = vmatprep.subr.mxu0 0.0
        %308 = vmatpush2.msra.mxu0 0.0
        %309 = vmatprep.subr.mxu0 0.0
        %310 = vmatpush2.msra.mxu0 0.0
        %311 = vmatprep.subr.mxu0 0.0
        %312 = vmatpush2.msra.mxu0 0.0
        %313 = vmatprep.subr.mxu0 0.0
        %314 = vmatpush2.msra.mxu0 0.0
        %315 = vmatprep.subr.mxu0 0.0
        %316 = vmatpush2.msra.mxu0 0.0
        %317 = vmatprep.subr.mxu0 0.0
        %318 = vmatpush2.msra.mxu0 0.0
        %319 = vmatprep.subr.mxu0 0.0
        %320 = vmatpush2.msra.mxu0 0.0
        %321 = vmatprep.subr.mxu0 0.0
        %322 = vmatpush2.msra.mxu0 0.0
        %323 = vmatprep.subr.mxu0 0.0
        %324 = vmatpush2.msra.mxu0 0.0
        %325 = vmatprep.subr.mxu0 0.0
        %326 = vmatpush2.msra.mxu0 0.0
        %327 = vmatprep.mubr.f32.mxu0 0.0
        %328 = vmatmul.mubr.f32.gmra.mxu0 %v261
        %v329 = vpop.f32.mrf.mxu0
        %v330 = vadd.f32 0.0, %v329
        %v331 = vpop.f32.mrf.mxu0
        %332 = vdwg.mxu0
        %v333 = vmax.f32 %v330, 0.0
        %v338 = vlaneseq
        %v339 = vshrl.u32 %v338, 7
        %v340 = vsub.s32 %v234, %v339
        %v341 = vrot.slane %v214, %v340
        %v342 = vlaneseq
        %v343 = vshrl.u32 %v342, 7
        %v344 = vsub.s32 %v239, %v343
        %v345 = vrot.slane %v217, %v344
        %v346 = vsel %vm244, %v345, %v341
        %v347 = vlaneseq
        %v348 = vshrl.u32 %v347, 7
        %v349 = vsub.s32 %v246, %v348
        %v350 = vrot.slane %v220, %v349
        %v351 = vsel %vm251, %v350, %v346
        %v352 = vlaneseq
        %v353 = vshrl.u32 %v352, 7
        %v354 = vsub.s32 %v253, %v353
        %v355 = vrot.slane %v223, %v354
        %v356 = vsel %vm258, %v355, %v351
        %v357 = vsel %vm260, %v356, 0
        %359 = vmatprep.subr.mxu0 0.0
        %360 = vmatpush1.msra.mxu0 0.0
        %361 = vmatprep.subr.mxu0 0.0
        %362 = vmatpush1.msra.mxu0 0.0
        %363 = vmatprep.subr.mxu0 0.0
        %364 = vmatpush1.msra.mxu0 0.0
        %365 = vmatprep.subr.mxu0 0.0
        %366 = vmatpush1.msra.mxu0 0.0
        %367 = vmatprep.subr.mxu0 0.0
        %368 = vmatpush1.msra.mxu0 0.0
        %369 = vmatprep.subr.mxu0 0.0
        %370 = vmatpush1.msra.mxu0 0.0
        %371 = vmatprep.subr.mxu0 0.0
        %372 = vmatpush1.msra.mxu0 0.0
        %373 = vmatprep.subr.mxu0 0.0
        %374 = vmatpush1.msra.mxu0 0.0
        %375 = vmatprep.subr.mxu0 0.0
        %376 = vmatpush1.msra.mxu0 0.0
        %377 = vmatprep.subr.mxu0 0.0
        %378 = vmatpush1.msra.mxu0 0.0
        %379 = vmatprep.subr.mxu0 0.0
        %380 = vmatpush1.msra.mxu0 0.0
        %381 = vmatprep.subr.mxu0 0.0
        %382 = vmatpush1.msra.mxu0 0.0
        %383 = vmatprep.subr.mxu0 0.0
        %384 = vmatpush1.msra.mxu0 %v227
        %385 = vmatprep.subr.mxu0 0.0
        %386 = vmatpush1.msra.mxu0 %v226
        %387 = vmatprep.subr.mxu0 0.0
        %388 = vmatpush1.msra.mxu0 %v225
        %389 = vmatprep.subr.mxu0 0.0
        %390 = vmatpush1.msra.mxu0 %v224
        %391 = vmatprep.subr.mxu0 0.0
        %392 = vmatpush2.msra.mxu0 0.0
        %393 = vmatprep.subr.mxu0 0.0
        %394 = vmatpush2.msra.mxu0 0.0
        %395 = vmatprep.subr.mxu0 0.0
        %396 = vmatpush2.msra.mxu0 0.0
        %397 = vmatprep.subr.mxu0 0.0
        %398 = vmatpush2.msra.mxu0 0.0
        %399 = vmatprep.subr.mxu0 0.0
        %400 = vmatpush2.msra.mxu0 0.0
        %401 = vmatprep.subr.mxu0 0.0
        %402 = vmatpush2.msra.mxu0 0.0
        %403 = vmatprep.subr.mxu0 0.0
        %404 = vmatpush2.msra.mxu0 0.0
        %405 = vmatprep.subr.mxu0 0.0
        %406 = vmatpush2.msra.mxu0 0.0
        %407 = vmatprep.subr.mxu0 0.0
        %408 = vmatpush2.msra.mxu0 0.0
        %409 = vmatprep.subr.mxu0 0.0
        %410 = vmatpush2.msra.mxu0 0.0
        %411 = vmatprep.subr.mxu0 0.0
        %412 = vmatpush2.msra.mxu0 0.0
        %413 = vmatprep.subr.mxu0 0.0
        %414 = vmatpush2.msra.mxu0 0.0
        %415 = vmatprep.subr.mxu0 0.0
        %416 = vmatpush2.msra.mxu0 0.0
        %417 = vmatprep.subr.mxu0 0.0
        %418 = vmatpush2.msra.mxu0 0.0
        %419 = vmatprep.subr.mxu0 0.0
        %420 = vmatpush2.msra.mxu0 0.0
        %421 = vmatprep.subr.mxu0 0.0
        %422 = vmatpush2.msra.mxu0 0.0
        %423 = vmatprep.mubr.f32.mxu0 0.0
        %424 = vmatmul.mubr.f32.gmra.mxu0 %v357
        %v425 = vpop.f32.mrf.mxu0
        %v426 = vadd.f32 0.0, %v425
        %v427 = vpop.f32.mrf.mxu0
        %428 = vdwg.mxu0
        %v429 = vmax.f32 %v426, 0.0
        %v430 = vadd.f32 %v333, %v429
        %vm431 = vcmask 15360
        %v433 = vsel %vm431, %v430, 0
        %vm435 = vcmask 1041408
        %v437 = vsel %vm435, %v228, 0
        %439 = vmatprep.subr.mxu0 0.0
        %440 = vmatpush1.msra.mxu0 0.0
        %441 = vmatprep.subr.mxu0 0.0
        %442 = vmatpush1.msra.mxu0 0.0
        %443 = vmatprep.subr.mxu0 0.0
        %444 = vmatpush1.msra.mxu0 0.0
        %445 = vmatprep.subr.mxu0 0.0
        %446 = vmatpush1.msra.mxu0 0.0
        %447 = vmatprep.subr.mxu0 0.0
        %448 = vmatpush1.msra.mxu0 0.0
        %449 = vmatprep.subr.mxu0 0.0
        %450 = vmatpush1.msra.mxu0 0.0
        %451 = vmatprep.subr.mxu0 0.0
        %452 = vmatpush1.msra.mxu0 0.0
        %453 = vmatprep.subr.mxu0 0.0
        %454 = vmatpush1.msra.mxu0 0.0
        %455 = vmatprep.subr.mxu0 0.0
        %456 = vmatpush1.msra.mxu0 0.0
        %457 = vmatprep.subr.mxu0 0.0
        %458 = vmatpush1.msra.mxu0 0.0
        %459 = vmatprep.subr.mxu0 0.0
        %460 = vmatpush1.msra.mxu0 0.0
        %461 = vmatprep.subr.mxu0 0.0
        %462 = vmatpush1.msra.mxu0 0.0
        %463 = vmatprep.subr.mxu0 0.0
        %464 = vmatpush1.msra.mxu0 0.0
        %465 = vmatprep.subr.mxu0 0.0
        %466 = vmatpush1.msra.mxu0 0.0
        %467 = vmatprep.subr.mxu0 0.0
        %468 = vmatpush1.msra.mxu0 0.0
        %469 = vmatprep.subr.mxu0 0.0
        %470 = vmatpush1.msra.mxu0 %v437
        %471 = vmatprep.subr.mxu0 0.0
        %472 = vmatpush2.msra.mxu0 0.0
        %473 = vmatprep.subr.mxu0 0.0
        %474 = vmatpush2.msra.mxu0 0.0
        %475 = vmatprep.subr.mxu0 0.0
        %476 = vmatpush2.msra.mxu0 0.0
        %477 = vmatprep.subr.mxu0 0.0
        %478 = vmatpush2.msra.mxu0 0.0
        %479 = vmatprep.subr.mxu0 0.0
        %480 = vmatpush2.msra.mxu0 0.0
        %481 = vmatprep.subr.mxu0 0.0
        %482 = vmatpush2.msra.mxu0 0.0
        %483 = vmatprep.subr.mxu0 0.0
        %484 = vmatpush2.msra.mxu0 0.0
        %485 = vmatprep.subr.mxu0 0.0
        %486 = vmatpush2.msra.mxu0 0.0
        %487 = vmatprep.subr.mxu0 0.0
        %488 = vmatpush2.msra.mxu0 0.0
        %489 = vmatprep.subr.mxu0 0.0
        %490 = vmatpush2.msra.mxu0 0.0
        %491 = vmatprep.subr.mxu0 0.0
        %492 = vmatpush2.msra.mxu0 0.0
        %493 = vmatprep.subr.mxu0 0.0
        %494 = vmatpush2.msra.mxu0 0.0
        %495 = vmatprep.subr.mxu0 0.0
        %496 = vmatpush2.msra.mxu0 0.0
        %497 = vmatprep.subr.mxu0 0.0
        %498 = vmatpush2.msra.mxu0 0.0
        %499 = vmatprep.subr.mxu0 0.0
        %500 = vmatpush2.msra.mxu0 0.0
        %501 = vmatprep.subr.mxu0 0.0
        %502 = vmatpush2.msra.mxu0 0.0
        %503 = vmatprep.mubr.f32.mxu0 0.0
        %504 = vmatmul.mubr.f32.gmra.mxu0 %v433
        %v505 = vpop.f32.mrf.mxu0
        %v506 = vadd.f32 0.0, %v505
        %v507 = vpop.f32.mrf.mxu0
        %508 = vdwg.mxu0
        %v509 = vxor.u32 %v506, 2147483648
        %v510 = vmul.f32 %v509, 1.442695
        %v511 = vpow.pop %v510
        %v512 = vadd.f32 %v511, 1.0
        %v513 = vrcp.pop %v512
        %v514 = vmul.f32 1.0, %v513
        %vm515 = vcmask 253952
        %516 = vst.msk [vmem:[%s187] sm:$0x1] %vm515, %v514
        %s517 = sand.u32 %s96, 1
        %s518 = scalar_lea.sflag [#allocation4], %s517
        %s519 = sand.u32 %s96, 1
        %s520 = scalar_lea.vmem [#allocation5], %s519
        // Predicated region
        $region37: #{tpu_custom_call.1} parent=31 // pred_check
          %p521 = pneg %p106
        $region38: #{tpu_custom_call.1} parent=31 // pred_check_branch
          %523 = sbr.rel (%p521) target = $region40
        $region39: #{tpu_custom_call.1} parent=31 // pred_region
          %s525 = ssub.s32 16, 16
          %526 = vsyncadd %s518, %s525
          %s527 = smul.addr %s20, 16
          %s528 = scalar_lea.hbm %s3, %s527
          %s530 = sshll.u32 %s520, 4
          %s531 = int_to_ptr.vmem [resolvable:$true] %s530
          %533 = dma.vmem_to_hbm [thread:$0]  %s531, 16, %s528, %s518
        $region40: #{tpu_custom_call.1} parent=31 // pred_fallthru
          _
      $region32: #{tpu_custom_call.1} parent=5 // pred_fallthru
        _
      %p534 = scmp.le.s32.totalorder 2, %s15
      // Predicated region
      $region41: #{tpu_custom_call.1} parent=5 // pred_check
        %p535 = pneg %p534
      $region42: #{tpu_custom_call.1} parent=5 // pred_check_branch
        %537 = sbr.rel (%p535) target = $region44
      $region43: #{tpu_custom_call.1} parent=5 // pred_region
        %s538 = ssub.s32 %s15, 2
        // Predicated region
        $region45: #{tpu_custom_call.1} parent=43 // pred_check
          %p539 = pneg %p112
        $region46: #{tpu_custom_call.1} parent=43 // pred_check_branch
          %541 = sbr.rel (%p539) target = $region48
        $region47: #{tpu_custom_call.1} parent=43 // pred_region
          %s542 = sand.u32 %s97, 1
          %s543 = scalar_lea.sflag [#allocation4], %s542
          %s544 = sand.u32 %s97, 1
          %s545 = scalar_lea.vmem [#allocation5], %s544
          %546 = dma.done %s543, 16
        $region48: #{tpu_custom_call.1} parent=43 // pred_fallthru
          _
      $region44: #{tpu_custom_call.1} parent=5 // pred_fallthru
        _
    $region6: #{tpu_custom_call.1} parent=1 // loop_footer
      %s19 = sadd.s32 1, %s15
    $region7: #{tpu_custom_call.1} parent=1 // loop_footer_branch
      %14 = sbr.rel target = $region3
    $region8: #{tpu_custom_call.1} parent=1 // loop_exit
      _
    %547 = vsyncpa [#allocation3], 1
    %s548 = scalar_lea.sflag [#allocation3], 1
    %549 = vsyncpa %s548, 1
    %550 = vsyncpa [#allocation4], 1
    %s551 = scalar_lea.sflag [#allocation4], 1
    %552 = vsyncpa %s551, 1

</llo_original>
